<compile_context>
chip_gen: v5e
topology: v5e:2x2
jax: 0.10.0
libtpu: 0.0.40
codegen_flags: <defaults>
</compile_context>

<pallas_src>
import functools

import jax
import jax.numpy as jnp
from jax.experimental import pallas as pl
from jax.experimental.pallas import tpu as pltpu

# Small, module-consistent hyperparameters (opt.nz / opt.ngf / nc).
NZ, NGF, NC = 16, 8, 3
BN_EPS = 1e-5


def _convt_bn_act_kernel(w_ref, p_ref, g_ref, b_ref, o_ref, *, use_bn):
    """One fused (Cout, K) x (K, M_tile) MXU matmul + BatchNorm/ReLU or Tanh epilogue."""
    # Single matmul with the KH*KW taps folded into K; f32 accumulation on the MXU.
    acc = jnp.dot(w_ref[...], p_ref[...], preferred_element_type=jnp.float32)
    if use_bn:
        # BatchNorm2d training-mode forward: biased batch stats over N*H*W per channel.
        # (Only valid because the whole M extent is in this single block for BN layers.)
        mean = jnp.mean(acc, axis=1, keepdims=True)
        var = jnp.mean(jnp.square(acc - mean), axis=1, keepdims=True)
        y = (acc - mean) * (g_ref[...] * jax.lax.rsqrt(var + BN_EPS)) + b_ref[...]
        y = jnp.maximum(y, 0.0)  # ReLU(True)
    else:
        y = jnp.tanh(acc)  # final Tanh, no BN, no bias (bias=False in the module)
    o_ref[...] = y.astype(o_ref.dtype)


def _dilate_and_pad(x_nhwc, stride, pad, k):
    """ConvTranspose = conv of stride-dilated, (k-1-pad)-padded input with flipped kernel."""
    n, h, w, c = x_nhwc.shape
    if stride > 1:
        xd = jnp.zeros((n, (h - 1) * stride + 1, (w - 1) * stride + 1, c), x_nhwc.dtype)
        xd = xd.at[:, ::stride, ::stride, :].set(x_nhwc)
    else:
        xd = x_nhwc
    pp = k - 1 - pad
    return jnp.pad(xd, ((0, 0), (pp, pp), (pp, pp), (0, 0)))


def convt_bn_act(x_nhwc, w_pt, gamma, beta, *, stride, pad, use_bn):
    """One (ConvTranspose2d -> [BatchNorm2d -> ReLU] | Tanh) block via a Pallas kernel.

    x_nhwc : (N, H, W, Cin) float32
    w_pt   : (Cin, Cout, KH, KW) float32  -- PyTorch ConvTranspose2d weight layout
    """
    n, h, w, cin = x_nhwc.shape
    cin_w, cout, kh, kw = w_pt.shape
    assert cin == cin_w
    hout = (h - 1) * stride - 2 * pad + kh
    wout = (w - 1) * stride - 2 * pad + kw
    m = n * hout * wout
    k_dim = kh * kw * cin

    # --- JAX glue: dilate/pad, build the (K, M) im2col slab once, flip weights ---
    xp = _dilate_and_pad(x_nhwc, stride, pad, kh)
    taps = jnp.stack(
        [xp[:, i : i + hout, j : j + wout, :] for i in range(kh) for j in range(kw)],
        axis=0,
    )  # (T, N, Hout, Wout, Cin), T = KH*KW
    # p_t[(t, ci), m] = xp[n, y+i, x+j, ci]  with m flattened over (n, y, x)
    p_t = jnp.transpose(taps, (0, 4, 1, 2, 3)).reshape(k_dim, m).astype(jnp.bfloat16)
    # w_t[co, (t, ci)] = w_pt[ci, co, KH-1-i, KW-1-j]   (flipped kernel)
    w_t = (
        jnp.transpose(w_pt[:, :, ::-1, ::-1], (1, 2, 3, 0))
        .reshape(cout, k_dim)
        .astype(jnp.bfloat16)
    )
    g2 = gamma.reshape(cout, 1).astype(jnp.float32)
    b2 = beta.reshape(cout, 1).astype(jnp.float32)

    # M-tiling: BN layers need whole-batch statistics -> single block; the final tanh
    # layer is split over M ("parallel") so v7x's two TensorCores can share the work.
    if (not use_bn) and m >= 4096 and m % 256 == 0:
        num_m_tiles = 2
    else:
        num_m_tiles = 1
    tile_m = m // num_m_tiles

    # --- Pallas hot path: one lane-dense matmul per layer, fused BN/activation ---
    out_cm = pl.pallas_call(
        functools.partial(_convt_bn_act_kernel, use_bn=use_bn),
        out_shape=jax.ShapeDtypeStruct((cout, m), jnp.float32),
        grid=(num_m_tiles,),
        in_specs=[
            pl.BlockSpec((cout, k_dim), lambda i: (0, 0)),
            pl.BlockSpec((k_dim, tile_m), lambda i: (0, i)),
            pl.BlockSpec((cout, 1), lambda i: (0, 0)),
            pl.BlockSpec((cout, 1), lambda i: (0, 0)),
        ],
        out_specs=pl.BlockSpec((cout, tile_m), lambda i: (0, i)),
        compiler_params=pltpu.CompilerParams(
            dimension_semantics=("parallel",),
            vmem_limit_bytes=32 * 1024 * 1024,  # real footprint is only a few MiB
        ),
    )(w_t, p_t, g2, b2)

    # (Cout, M) -> (N, Hout, Wout, Cout)
    return jnp.transpose(out_cm.reshape(cout, n, hout, wout), (1, 2, 3, 0))


def init_generator_params(key):
    """Deterministic synthetic parameters matching the DCGAN Generator layer shapes."""
    # (Cin, Cout, stride, pad, has_bn)
    layer_cfg = [
        (NZ, NGF * 8, 1, 0, True),
        (NGF * 8, NGF * 4, 2, 1, True),
        (NGF * 4, NGF * 2, 2, 1, True),
        (NGF * 2, NGF, 2, 1, True),
        (NGF, NC, 2, 1, False),
    ]
    params = []
    for cin, cout, stride, pad, has_bn in layer_cfg:
        key, kw_, kg_ = jax.random.split(key, 3)
        w = 0.02 * jax.random.normal(kw_, (cin, cout, 4, 4), jnp.float32)
        if has_bn:
            gamma = 1.0 + 0.02 * jax.random.normal(kg_, (cout,), jnp.float32)
            beta = jnp.zeros((cout,), jnp.float32)
        else:  # final layer: no BatchNorm; epilogue is plain tanh (gamma/beta unused)
            gamma = jnp.ones((cout,), jnp.float32)
            beta = jnp.zeros((cout,), jnp.float32)
        params.append(dict(w=w, gamma=gamma, beta=beta, stride=stride, pad=pad, bn=has_bn))
    return params


def generator_forward(z_nchw, params):
    """DCGAN Generator forward. z_nchw: (N, nz, 1, 1). Returns (N, nc, 64, 64)."""
    x = jnp.transpose(z_nchw, (0, 2, 3, 1))  # NCHW -> NHWC
    for p in params:
        x = convt_bn_act(
            x, p["w"], p["gamma"], p["beta"],
            stride=p["stride"], pad=p["pad"], use_bn=p["bn"],
        )
    return jnp.transpose(x, (0, 3, 1, 2))  # NHWC -> NCHW


if __name__ == "__main__":
    key = jax.random.PRNGKey(0)
    kz, kp = jax.random.split(key)
    batch = 2
    z = jax.random.normal(kz, (batch, NZ, 1, 1), jnp.float32)
    params = init_generator_params(kp)

    out = generator_forward(z, params)
    out = jax.block_until_ready(out)

    assert out.shape == (batch, NC, 64, 64), out.shape
    assert out.dtype == jnp.float32
    assert bool(jnp.all(jnp.isfinite(out)))
    assert bool(jnp.all(jnp.abs(out) <= 1.0 + 1e-6))  # tanh output range
    print("KERNEL_OK")
</pallas_src>

<mosaic_0001>
module attributes {stable_mosaic.version = 11 : i64} {
  func.func @_convt_bn_act_kernel(%arg0: i32, %arg1: memref<64x256xbf16, #tpu.memory_space<vmem>>, %arg2: memref<256x32xbf16, #tpu.memory_space<vmem>>, %arg3: memref<64x1xf32, #tpu.memory_space<vmem>>, %arg4: memref<64x1xf32, #tpu.memory_space<vmem>>, %arg5: memref<64x32xf32, #tpu.memory_space<vmem>>) attributes {dimension_semantics = [#tpu.dimension_semantics<parallel>], iteration_bounds = array<i64: 1>, scalar_prefetch = 0 : i64, scratch_operands = 0 : i64, tpu.core_type = #tpu.core_type<tc>, window_params = [{pipeline_mode = #tpu.pipeline_mode<synchronous>, transform_indices = @transform_0, window_bounds = array<i64: 64, 256>}, {transform_indices = @transform_1, window_bounds = array<i64: 256, 32>}, {pipeline_mode = #tpu.pipeline_mode<synchronous>, transform_indices = @transform_2, window_bounds = array<i64: 64, 1>}, {pipeline_mode = #tpu.pipeline_mode<synchronous>, transform_indices = @transform_3, window_bounds = array<i64: 64, 1>}, {transform_indices = @transform_4, window_bounds = array<i64: 64, 32>}]} {
    %c0 = arith.constant 0 : index
    %c0_0 = arith.constant 0 : index
    %0 = vector.load %arg1[%c0, %c0_0] : memref<64x256xbf16, #tpu.memory_space<vmem>>, vector<64x256xbf16>
    %c0_1 = arith.constant 0 : index
    %c0_2 = arith.constant 0 : index
    %1 = vector.load %arg2[%c0_1, %c0_2] : memref<256x32xbf16, #tpu.memory_space<vmem>>, vector<256x32xbf16>
    %cst = arith.constant dense<0.000000e+00> : vector<64x32xf32>
    %2 = tpu.matmul %0, %1, %cst {dimension_numbers = #tpu.dot_dimension_numbers<[1], [0], [0], [1], [0, 0, 1, 1], [], []>} : vector<64x256xbf16>, vector<256x32xbf16>, vector<64x32xf32> -> vector<64x32xf32>
    %cst_3 = arith.constant dense<0.000000e+00> : vector<64xf32>
    %3 = vector.multi_reduction <add>, %2, %cst_3 [1] : vector<64x32xf32> to vector<64xf32>
    %4 = vector.shape_cast %3 : vector<64xf32> to vector<64x1xf32>
    %cst_4 = arith.constant 3.200000e+01 : f32
    %5 = vector.broadcast %cst_4 : f32 to vector<64x1xf32>
    %6 = arith.divf %4, %5 : vector<64x1xf32>
    %7 = vector.broadcast %6 : vector<64x1xf32> to vector<64x32xf32>
    %8 = arith.subf %2, %7 : vector<64x32xf32>
    %9 = arith.mulf %8, %8 : vector<64x32xf32>
    %cst_5 = arith.constant dense<0.000000e+00> : vector<64xf32>
    %10 = vector.multi_reduction <add>, %9, %cst_5 [1] : vector<64x32xf32> to vector<64xf32>
    %11 = vector.shape_cast %10 : vector<64xf32> to vector<64x1xf32>
    %cst_6 = arith.constant 3.200000e+01 : f32
    %12 = vector.broadcast %cst_6 : f32 to vector<64x1xf32>
    %13 = arith.divf %11, %12 : vector<64x1xf32>
    %14 = vector.broadcast %6 : vector<64x1xf32> to vector<64x32xf32>
    %15 = arith.subf %2, %14 : vector<64x32xf32>
    %c0_7 = arith.constant 0 : index
    %c0_8 = arith.constant 0 : index
    %16 = vector.load %arg3[%c0_7, %c0_8] : memref<64x1xf32, #tpu.memory_space<vmem>>, vector<64x1xf32>
    %cst_9 = arith.constant 9.99999974E-6 : f32
    %17 = vector.broadcast %cst_9 : f32 to vector<64x1xf32>
    %18 = arith.addf %13, %17 : vector<64x1xf32>
    %19 = math.rsqrt %18 : vector<64x1xf32>
    %20 = arith.mulf %16, %19 : vector<64x1xf32>
    %21 = vector.broadcast %20 : vector<64x1xf32> to vector<64x32xf32>
    %22 = arith.mulf %15, %21 : vector<64x32xf32>
    %c0_10 = arith.constant 0 : index
    %c0_11 = arith.constant 0 : index
    %23 = vector.load %arg4[%c0_10, %c0_11] : memref<64x1xf32, #tpu.memory_space<vmem>>, vector<64x1xf32>
    %24 = vector.broadcast %23 : vector<64x1xf32> to vector<64x32xf32>
    %25 = arith.addf %22, %24 : vector<64x32xf32>
    %cst_12 = arith.constant 0.000000e+00 : f32
    %26 = vector.broadcast %cst_12 : f32 to vector<64x32xf32>
    %27 = arith.maximumf %25, %26 : vector<64x32xf32>
    %c0_13 = arith.constant 0 : index
    %c0_14 = arith.constant 0 : index
    %28 = vector.load %arg5[%c0_13, %c0_14] : memref<64x32xf32, #tpu.memory_space<vmem>>, vector<64x32xf32>
    tpu.vector_store %arg5[%c0_13, %c0_14], %27 {strides = array<i32>} : memref<64x32xf32, #tpu.memory_space<vmem>>, vector<64x32xf32>,
    return
  }
  func.func @transform_0(%arg0: i32) -> (i32, i32) {
    %c0_i32 = arith.constant 0 : i32
    %c0_i32_0 = arith.constant 0 : i32
    %c0_i32_1 = arith.constant 0 : i32
    return %c0_i32, %c0_i32_0 : i32, i32
  }
  func.func @transform_1(%arg0: i32) -> (i32, i32) {
    %c0_i32 = arith.constant 0 : i32
    %c0_i32_0 = arith.constant 0 : i32
    return %c0_i32, %arg0 : i32, i32
  }
  func.func @transform_2(%arg0: i32) -> (i32, i32) {
    %c0_i32 = arith.constant 0 : i32
    %c0_i32_0 = arith.constant 0 : i32
    %c0_i32_1 = arith.constant 0 : i32
    return %c0_i32, %c0_i32_0 : i32, i32
  }
  func.func @transform_3(%arg0: i32) -> (i32, i32) {
    %c0_i32 = arith.constant 0 : i32
    %c0_i32_0 = arith.constant 0 : i32
    %c0_i32_1 = arith.constant 0 : i32
    return %c0_i32, %c0_i32_0 : i32, i32
  }
  func.func @transform_4(%arg0: i32) -> (i32, i32) {
    %c0_i32 = arith.constant 0 : i32
    %c0_i32_0 = arith.constant 0 : i32
    return %c0_i32, %arg0 : i32, i32
  }
}

</mosaic_0001>

<llo_original>
// kernel: tpu_custom_call.1
$region0: #{tpu_custom_call.1}
  #allocation0 [shape = 'u32[]', space=smem, size = 0x4, offset = 0x4, fixed_abs, tag = 'smem constant byte address 0x4 - core index']
  #allocation1 [shape = 'u32[72,128]{1,0:T(1,128)}', space=vmem, size = 0x9000, scoped, tag = 'internal scratch']
  %s0 = inlined_call_operand.vmem [shape: bf16[64,256], index: 0, kind: input, shape index: {}]
  %s1 = inlined_call_operand.vmem [shape: bf16[256,32], index: 1, kind: input, shape index: {}]
  %s2 = inlined_call_operand.vmem [shape: f32[64,1], index: 2, kind: input, shape index: {}]
  %s3 = inlined_call_operand.vmem [shape: f32[64,1], index: 3, kind: input, shape index: {}]
  %s4 = inlined_call_operand.vmem [shape: f32[64,32], index: 4, kind: output, shape index: {}]
  %s5 = sld [smem:[#allocation0]]
  $region26: #{tpu_custom_call.1} parent=0
    _
  %s7 = ssub.s32 1, %s5
  %s8 = scalar_select 0, %s7, %s5
  // Predicated region
  $region2: #{tpu_custom_call.1} parent=0 // pred_check
    _
  $region3: #{tpu_custom_call.1} parent=0 // pred_check_branch
    %10 = sbr.rel (0) target = $region5
  $region4: #{tpu_custom_call.1} parent=0 // pred_region
    _
  $region5: #{tpu_custom_call.1} parent=0 // pred_fallthru
    _
  // Predicated region
  $region6: #{tpu_custom_call.1} parent=0 // pred_check
    _
  $region7: #{tpu_custom_call.1} parent=0 // pred_check_branch
    %12 = sbr.rel (0) target = $region9
  $region8: #{tpu_custom_call.1} parent=0 // pred_region
    _
  $region9: #{tpu_custom_call.1} parent=0 // pred_fallthru
    _
  // Predicated region
  $region10: #{tpu_custom_call.1} parent=0 // pred_check
    _
  $region11: #{tpu_custom_call.1} parent=0 // pred_check_branch
    %14 = sbr.rel (0) target = $region13
  $region12: #{tpu_custom_call.1} parent=0 // pred_region
    _
  $region13: #{tpu_custom_call.1} parent=0 // pred_fallthru
    _
  // Predicated region
  $region14: #{tpu_custom_call.1} parent=0 // pred_check
    _
  $region15: #{tpu_custom_call.1} parent=0 // pred_check_branch
    %16 = sbr.rel (0) target = $region17
  $region16: #{tpu_custom_call.1} parent=0 // pred_region
    _
  $region17: #{tpu_custom_call.1} parent=0 // pred_fallthru
    _
  %v17 = vld [vmem:[%s0] sm:$0xff]
  %v18 = vld [vmem:[%s0 + $0x8] sm:$0xff]
  %v19 = vld [vmem:[%s0 + $0x10] sm:$0xff]
  %v20 = vld [vmem:[%s0 + $0x18] sm:$0xff]
  %v21 = vld [vmem:[%s0 + $0x20] sm:$0xff]
  %v22 = vld [vmem:[%s0 + $0x28] sm:$0xff]
  %v23 = vld [vmem:[%s0 + $0x30] sm:$0xff]
  %v24 = vld [vmem:[%s0 + $0x38] sm:$0xff]
  %v25 = vld [vmem:[%s1] sm:$0xf]
  %v26 = vld [vmem:[%s1 + $0x4] sm:$0xf]
  %v27 = vld [vmem:[%s1 + $0x8] sm:$0xf]
  %v28 = vld [vmem:[%s1 + $0xc] sm:$0xf]
  %v29 = vld [vmem:[%s1 + $0x10] sm:$0xf]
  %v30 = vld [vmem:[%s1 + $0x14] sm:$0xf]
  %v31 = vld [vmem:[%s1 + $0x18] sm:$0xf]
  %v32 = vld [vmem:[%s1 + $0x1c] sm:$0xf]
  %v33 = vld [vmem:[%s1 + $0x20] sm:$0xf]
  %v34 = vld [vmem:[%s1 + $0x24] sm:$0xf]
  %v35 = vld [vmem:[%s1 + $0x28] sm:$0xf]
  %v36 = vld [vmem:[%s1 + $0x2c] sm:$0xf]
  %v37 = vld [vmem:[%s1 + $0x30] sm:$0xf]
  %v38 = vld [vmem:[%s1 + $0x34] sm:$0xf]
  %v39 = vld [vmem:[%s1 + $0x38] sm:$0xf]
  %v40 = vld [vmem:[%s1 + $0x3c] sm:$0xf]
  %v41 = vld [vmem:[%s1 + $0x40] sm:$0xf]
  %v42 = vld [vmem:[%s1 + $0x44] sm:$0xf]
  %v43 = vld [vmem:[%s1 + $0x48] sm:$0xf]
  %v44 = vld [vmem:[%s1 + $0x4c] sm:$0xf]
  %v45 = vld [vmem:[%s1 + $0x50] sm:$0xf]
  %v46 = vld [vmem:[%s1 + $0x54] sm:$0xf]
  %v47 = vld [vmem:[%s1 + $0x58] sm:$0xf]
  %v48 = vld [vmem:[%s1 + $0x5c] sm:$0xf]
  %v49 = vld [vmem:[%s1 + $0x60] sm:$0xf]
  %v50 = vld [vmem:[%s1 + $0x64] sm:$0xf]
  %v51 = vld [vmem:[%s1 + $0x68] sm:$0xf]
  %v52 = vld [vmem:[%s1 + $0x6c] sm:$0xf]
  %v53 = vld [vmem:[%s1 + $0x70] sm:$0xf]
  %v54 = vld [vmem:[%s1 + $0x74] sm:$0xf]
  %v55 = vld [vmem:[%s1 + $0x78] sm:$0xf]
  %v56 = vld [vmem:[%s1 + $0x7c] sm:$0xf]
  %v65 = vunpack.c.l.b16 %v17
  %v66 = vunpack.c.h.b16 %v17
  %v67 = vunpack.c.l.b16 %v18
  %v68 = vunpack.c.h.b16 %v18
  %v69 = vunpack.c.l.b16 %v19
  %v70 = vunpack.c.h.b16 %v19
  %v71 = vunpack.c.l.b16 %v20
  %v72 = vunpack.c.h.b16 %v20
  %v73 = vunpack.c.l.b16 %v21
  %v74 = vunpack.c.h.b16 %v21
  %v75 = vunpack.c.l.b16 %v22
  %v76 = vunpack.c.h.b16 %v22
  %v77 = vunpack.c.l.b16 %v23
  %v78 = vunpack.c.h.b16 %v23
  %v79 = vunpack.c.l.b16 %v24
  %v80 = vunpack.c.h.b16 %v24
  %v81 = vpack.c.b16 %v67, %v65
  %v82 = vpack.c.b16 %v68, %v66
  %v83 = vpack.c.b16 %v71, %v69
  %v84 = vpack.c.b16 %v72, %v70
  %v85 = vpack.c.b16 %v75, %v73
  %v86 = vpack.c.b16 %v76, %v74
  %v87 = vpack.c.b16 %v79, %v77
  %v88 = vpack.c.b16 %v80, %v78
  %v129 = vunpack.c.l.b16 %v25
  %v130 = vunpack.c.l.b16 %v26
  %v131 = vunpack.c.l.b16 %v27
  %v132 = vunpack.c.l.b16 %v28
  %v133 = vunpack.c.l.b16 %v29
  %v134 = vunpack.c.l.b16 %v30
  %v135 = vunpack.c.l.b16 %v31
  %v136 = vunpack.c.l.b16 %v32
  %v137 = vunpack.c.l.b16 %v33
  %v138 = vunpack.c.l.b16 %v34
  %v139 = vunpack.c.l.b16 %v35
  %v140 = vunpack.c.l.b16 %v36
  %v141 = vunpack.c.l.b16 %v37
  %v142 = vunpack.c.l.b16 %v38
  %v143 = vunpack.c.l.b16 %v39
  %v144 = vunpack.c.l.b16 %v40
  %v145 = vunpack.c.l.b16 %v41
  %v146 = vunpack.c.l.b16 %v42
  %v147 = vunpack.c.l.b16 %v43
  %v148 = vunpack.c.l.b16 %v44
  %v149 = vunpack.c.l.b16 %v45
  %v150 = vunpack.c.l.b16 %v46
  %v151 = vunpack.c.l.b16 %v47
  %v152 = vunpack.c.l.b16 %v48
  %v153 = vunpack.c.l.b16 %v49
  %v154 = vunpack.c.l.b16 %v50
  %v155 = vunpack.c.l.b16 %v51
  %v156 = vunpack.c.l.b16 %v52
  %v157 = vunpack.c.l.b16 %v53
  %v158 = vunpack.c.l.b16 %v54
  %v159 = vunpack.c.l.b16 %v55
  %v160 = vunpack.c.l.b16 %v56
  %v161 = vpack.c.b16 %v130, %v129
  %v162 = vpack.c.b16 %v132, %v131
  %v163 = vpack.c.b16 %v134, %v133
  %v164 = vpack.c.b16 %v136, %v135
  %v165 = vpack.c.b16 %v138, %v137
  %v166 = vpack.c.b16 %v140, %v139
  %v167 = vpack.c.b16 %v142, %v141
  %v168 = vpack.c.b16 %v144, %v143
  %v169 = vpack.c.b16 %v146, %v145
  %v170 = vpack.c.b16 %v148, %v147
  %v171 = vpack.c.b16 %v150, %v149
  %v172 = vpack.c.b16 %v152, %v151
  %v173 = vpack.c.b16 %v154, %v153
  %v174 = vpack.c.b16 %v156, %v155
  %v175 = vpack.c.b16 %v158, %v157
  %v176 = vpack.c.b16 %v160, %v159
  %193 = vmatpush.bf16.msra.mxu0 %v168
  %194 = vmatpush.bf16.msra.mxu0 %v167
  %195 = vmatpush.bf16.msra.mxu0 %v166
  %196 = vmatpush.bf16.msra.mxu0 %v165
  %197 = vmatpush.bf16.msra.mxu0 %v164
  %198 = vmatpush.bf16.msra.mxu0 %v163
  %199 = vmatpush.bf16.msra.mxu0 %v162
  %200 = vmatpush.bf16.msra.mxu0 %v161
  %201 = vmatmul.bf16.gmra.mxu0 %v81
  %v202 = vpop.f32.mrf.mxu0
  %v203 = vadd.f32 0.0, %v202
  %v204 = vpop.f32.mrf.mxu0
  %v205 = vadd.f32 0.0, %v204
  %206 = vmatmul.bf16.gmra.mxu0 %v83
  %v207 = vpop.f32.mrf.mxu0
  %v208 = vadd.f32 0.0, %v207
  %v209 = vpop.f32.mrf.mxu0
  %v210 = vadd.f32 0.0, %v209
  %211 = vmatmul.bf16.gmra.mxu0 %v85
  %v212 = vpop.f32.mrf.mxu0
  %v213 = vadd.f32 0.0, %v212
  %v214 = vpop.f32.mrf.mxu0
  %v215 = vadd.f32 0.0, %v214
  %216 = vmatmul.bf16.gmra.mxu0 %v87
  %v217 = vpop.f32.mrf.mxu0
  %v218 = vadd.f32 0.0, %v217
  %v219 = vpop.f32.mrf.mxu0
  %v220 = vadd.f32 0.0, %v219
  %221 = vdwg.mxu0
  %222 = vmatpush.bf16.msra.mxu0 %v176
  %223 = vmatpush.bf16.msra.mxu0 %v175
  %224 = vmatpush.bf16.msra.mxu0 %v174
  %225 = vmatpush.bf16.msra.mxu0 %v173
  %226 = vmatpush.bf16.msra.mxu0 %v172
  %227 = vmatpush.bf16.msra.mxu0 %v171
  %228 = vmatpush.bf16.msra.mxu0 %v170
  %229 = vmatpush.bf16.msra.mxu0 %v169
  %230 = vmatmul.bf16.gmra.mxu0 %v82
  %v231 = vpop.f32.mrf.mxu0
  %v232 = vadd.f32 %v203, %v231
  %v233 = vpop.f32.mrf.mxu0
  %v234 = vadd.f32 %v205, %v233
  %235 = vmatmul.bf16.gmra.mxu0 %v84
  %v236 = vpop.f32.mrf.mxu0
  %v237 = vadd.f32 %v208, %v236
  %v238 = vpop.f32.mrf.mxu0
  %v239 = vadd.f32 %v210, %v238
  %240 = vmatmul.bf16.gmra.mxu0 %v86
  %v241 = vpop.f32.mrf.mxu0
  %v242 = vadd.f32 %v213, %v241
  %v243 = vpop.f32.mrf.mxu0
  %v244 = vadd.f32 %v215, %v243
  %245 = vmatmul.bf16.gmra.mxu0 %v88
  %v246 = vpop.f32.mrf.mxu0
  %v247 = vadd.f32 %v218, %v246
  %v248 = vpop.f32.mrf.mxu0
  %v249 = vadd.f32 %v220, %v248
  %250 = vdwg.mxu0
  %vm251 = vcmask 261120
  %v252 = vsel %vm251, %v232, 0.0
  %253 = vadd.xlane.f32.xlu0 %v252
  %v254 = vpop.xlane.xlu0 %253
  %v255 = vsel %vm251, %v234, 0.0
  %256 = vadd.xlane.f32.xlu0 %v255
  %v257 = vpop.xlane.xlu0 %256
  %v258 = vsel %vm251, %v237, 0.0
  %259 = vadd.xlane.f32.xlu0 %v258
  %v260 = vpop.xlane.xlu0 %259
  %v261 = vsel %vm251, %v239, 0.0
  %262 = vadd.xlane.f32.xlu0 %v261
  %v263 = vpop.xlane.xlu0 %262
  %v264 = vsel %vm251, %v242, 0.0
  %265 = vadd.xlane.f32.xlu0 %v264
  %v266 = vpop.xlane.xlu0 %265
  %v267 = vsel %vm251, %v244, 0.0
  %268 = vadd.xlane.f32.xlu0 %v267
  %v269 = vpop.xlane.xlu0 %268
  %v270 = vsel %vm251, %v247, 0.0
  %271 = vadd.xlane.f32.xlu0 %v270
  %v272 = vpop.xlane.xlu0 %271
  %v273 = vsel %vm251, %v249, 0.0
  %274 = vadd.xlane.f32.xlu0 %v273
  %v275 = vpop.xlane.xlu0 %274
  %v276 = vrcp.pop 32.0
  %v277 = vmul.f32 32.0, %v276
  %v278 = vsub.f32 1.0, %v277
  %v279 = vmul.f32 %v276, %v278
  %v280 = vadd.f32 %v276, %v279
  %vm281 = vweird.f32 %v276
  %v282 = vsel %vm281, %v276, %v280
  %v283 = vmul.f32 %v254, %v282
  %v284 = vmul.f32 %v257, %v282
  %v285 = vmul.f32 %v260, %v282
  %v286 = vmul.f32 %v263, %v282
  %v287 = vmul.f32 %v266, %v282
  %v288 = vmul.f32 %v269, %v282
  %v289 = vmul.f32 %v272, %v282
  %v290 = vmul.f32 %v275, %v282
  %v291 = vsub.f32 %v232, %v283
  %v292 = vsub.f32 %v234, %v284
  %v293 = vsub.f32 %v237, %v285
  %v294 = vsub.f32 %v239, %v286
  %v295 = vsub.f32 %v242, %v287
  %v296 = vsub.f32 %v244, %v288
  %v297 = vsub.f32 %v247, %v289
  %v298 = vsub.f32 %v249, %v290
  %v299 = vmul.f32 %v291, %v291
  %v300 = vmul.f32 %v292, %v292
  %v301 = vmul.f32 %v293, %v293
  %v302 = vmul.f32 %v294, %v294
  %v303 = vmul.f32 %v295, %v295
  %v304 = vmul.f32 %v296, %v296
  %v305 = vmul.f32 %v297, %v297
  %v306 = vmul.f32 %v298, %v298
  %v307 = vsel %vm251, %v299, 0.0
  %308 = vadd.xlane.f32.xlu0 %v307
  %v309 = vpop.xlane.xlu0 %308
  %v310 = vsel %vm251, %v300, 0.0
  %311 = vadd.xlane.f32.xlu0 %v310
  %v312 = vpop.xlane.xlu0 %311
  %v313 = vsel %vm251, %v301, 0.0
  %314 = vadd.xlane.f32.xlu0 %v313
  %v315 = vpop.xlane.xlu0 %314
  %v316 = vsel %vm251, %v302, 0.0
  %317 = vadd.xlane.f32.xlu0 %v316
  %v318 = vpop.xlane.xlu0 %317
  %v319 = vsel %vm251, %v303, 0.0
  %320 = vadd.xlane.f32.xlu0 %v319
  %v321 = vpop.xlane.xlu0 %320
  %v322 = vsel %vm251, %v304, 0.0
  %323 = vadd.xlane.f32.xlu0 %v322
  %v324 = vpop.xlane.xlu0 %323
  %v325 = vsel %vm251, %v305, 0.0
  %326 = vadd.xlane.f32.xlu0 %v325
  %v327 = vpop.xlane.xlu0 %326
  %v328 = vsel %vm251, %v306, 0.0
  %329 = vadd.xlane.f32.xlu0 %v328
  %v330 = vpop.xlane.xlu0 %329
  %v331 = vmul.f32 %v309, %v282
  %v332 = vmul.f32 %v312, %v282
  %v333 = vmul.f32 %v315, %v282
  %v334 = vmul.f32 %v318, %v282
  %v335 = vmul.f32 %v321, %v282
  %v336 = vmul.f32 %v324, %v282
  %v337 = vmul.f32 %v327, %v282
  %v338 = vmul.f32 %v330, %v282
  %v339 = vld [vmem:[%s2] sm:$0xff]
  %v340 = vld [vmem:[%s2 + $0x8] sm:$0xff]
  %v341 = vld [vmem:[%s2 + $0x10] sm:$0xff]
  %v342 = vld [vmem:[%s2 + $0x18] sm:$0xff]
  %v343 = vld [vmem:[%s2 + $0x20] sm:$0xff]
  %v344 = vld [vmem:[%s2 + $0x28] sm:$0xff]
  %v345 = vld [vmem:[%s2 + $0x30] sm:$0xff]
  %v346 = vld [vmem:[%s2 + $0x38] sm:$0xff]
  %v347 = vadd.f32 %v331, 1e-05
  %v348 = vadd.f32 %v332, 1e-05
  %v349 = vadd.f32 %v333, 1e-05
  %v350 = vadd.f32 %v334, 1e-05
  %v351 = vadd.f32 %v335, 1e-05
  %v352 = vadd.f32 %v336, 1e-05
  %v353 = vadd.f32 %v337, 1e-05
  %v354 = vadd.f32 %v338, 1e-05
  %v355 = vrsqrt.pop %v347
  %v356 = vmul.f32 %v355, %v347
  %v357 = vmul.f32 %v356, %v355
  %v358 = vmul.f32 0.5, %v357
  %v359 = vsub.f32 1.5, %v358
  %v360 = vmul.f32 %v355, %v359
  %vm361 = vweird.f32 %v347
  %vm362 = vweird.f32 %v355
  %vm363 = vmor %vm361, %vm362
  %v364 = vsel %vm363, %v355, %v360
  %v365 = vrsqrt.pop %v348
  %v366 = vmul.f32 %v365, %v348
  %v367 = vmul.f32 %v366, %v365
  %v368 = vmul.f32 0.5, %v367
  %v369 = vsub.f32 1.5, %v368
  %v370 = vmul.f32 %v365, %v369
  %vm371 = vweird.f32 %v348
  %vm372 = vweird.f32 %v365
  %vm373 = vmor %vm371, %vm372
  %v374 = vsel %vm373, %v365, %v370
  %v375 = vrsqrt.pop %v349
  %v376 = vmul.f32 %v375, %v349
  %v377 = vmul.f32 %v376, %v375
  %v378 = vmul.f32 0.5, %v377
  %v379 = vsub.f32 1.5, %v378
  %v380 = vmul.f32 %v375, %v379
  %vm381 = vweird.f32 %v349
  %vm382 = vweird.f32 %v375
  %vm383 = vmor %vm381, %vm382
  %v384 = vsel %vm383, %v375, %v380
  %v385 = vrsqrt.pop %v350
  %v386 = vmul.f32 %v385, %v350
  %v387 = vmul.f32 %v386, %v385
  %v388 = vmul.f32 0.5, %v387
  %v389 = vsub.f32 1.5, %v388
  %v390 = vmul.f32 %v385, %v389
  %vm391 = vweird.f32 %v350
  %vm392 = vweird.f32 %v385
  %vm393 = vmor %vm391, %vm392
  %v394 = vsel %vm393, %v385, %v390
  %v395 = vrsqrt.pop %v351
  %v396 = vmul.f32 %v395, %v351
  %v397 = vmul.f32 %v396, %v395
  %v398 = vmul.f32 0.5, %v397
  %v399 = vsub.f32 1.5, %v398
  %v400 = vmul.f32 %v395, %v399
  %vm401 = vweird.f32 %v351
  %vm402 = vweird.f32 %v395
  %vm403 = vmor %vm401, %vm402
  %v404 = vsel %vm403, %v395, %v400
  %v405 = vrsqrt.pop %v352
  %v406 = vmul.f32 %v405, %v352
  %v407 = vmul.f32 %v406, %v405
  %v408 = vmul.f32 0.5, %v407
  %v409 = vsub.f32 1.5, %v408
  %v410 = vmul.f32 %v405, %v409
  %vm411 = vweird.f32 %v352
  %vm412 = vweird.f32 %v405
  %vm413 = vmor %vm411, %vm412
  %v414 = vsel %vm413, %v405, %v410
  %v415 = vrsqrt.pop %v353
  %v416 = vmul.f32 %v415, %v353
  %v417 = vmul.f32 %v416, %v415
  %v418 = vmul.f32 0.5, %v417
  %v419 = vsub.f32 1.5, %v418
  %v420 = vmul.f32 %v415, %v419
  %vm421 = vweird.f32 %v353
  %vm422 = vweird.f32 %v415
  %vm423 = vmor %vm421, %vm422
  %v424 = vsel %vm423, %v415, %v420
  %v425 = vrsqrt.pop %v354
  %v426 = vmul.f32 %v425, %v354
  %v427 = vmul.f32 %v426, %v425
  %v428 = vmul.f32 0.5, %v427
  %v429 = vsub.f32 1.5, %v428
  %v430 = vmul.f32 %v425, %v429
  %vm431 = vweird.f32 %v354
  %vm432 = vweird.f32 %v425
  %vm433 = vmor %vm431, %vm432
  %v434 = vsel %vm433, %v425, %v430
  %v435 = vmul.f32 %v339, %v364
  %v436 = vmul.f32 %v340, %v374
  %v437 = vmul.f32 %v341, %v384
  %v438 = vmul.f32 %v342, %v394
  %v439 = vmul.f32 %v343, %v404
  %v440 = vmul.f32 %v344, %v414
  %v441 = vmul.f32 %v345, %v424
  %v442 = vmul.f32 %v346, %v434
  %444 = vset.pattern.permute.xlu0 0
  %445 = vperm.xlu0 %444, %v435
  %v446 = vpop.permute.xlu0 %445
  %449 = vset.pattern.permute.xlu0 0
  %450 = vperm.xlu0 %449, %v436
  %v451 = vpop.permute.xlu0 %450
  %454 = vset.pattern.permute.xlu0 0
  %455 = vperm.xlu0 %454, %v437
  %v456 = vpop.permute.xlu0 %455
  %459 = vset.pattern.permute.xlu0 0
  %460 = vperm.xlu0 %459, %v438
  %v461 = vpop.permute.xlu0 %460
  %464 = vset.pattern.permute.xlu0 0
  %465 = vperm.xlu0 %464, %v439
  %v466 = vpop.permute.xlu0 %465
  %469 = vset.pattern.permute.xlu0 0
  %470 = vperm.xlu0 %469, %v440
  %v471 = vpop.permute.xlu0 %470
  %474 = vset.pattern.permute.xlu0 0
  %475 = vperm.xlu0 %474, %v441
  %v476 = vpop.permute.xlu0 %475
  %479 = vset.pattern.permute.xlu0 0
  %480 = vperm.xlu0 %479, %v442
  %v481 = vpop.permute.xlu0 %480
  %v483 = vmul.f32 %v291, %v446
  %v484 = vmul.f32 %v292, %v451
  %v485 = vmul.f32 %v293, %v456
  %v486 = vmul.f32 %v294, %v461
  %v487 = vmul.f32 %v295, %v466
  %v488 = vmul.f32 %v296, %v471
  %v489 = vmul.f32 %v297, %v476
  %v490 = vmul.f32 %v298, %v481
  %v491 = vld [vmem:[%s3] sm:$0xff]
  %v492 = vld [vmem:[%s3 + $0x8] sm:$0xff]
  %v493 = vld [vmem:[%s3 + $0x10] sm:$0xff]
  %v494 = vld [vmem:[%s3 + $0x18] sm:$0xff]
  %v495 = vld [vmem:[%s3 + $0x20] sm:$0xff]
  %v496 = vld [vmem:[%s3 + $0x28] sm:$0xff]
  %v497 = vld [vmem:[%s3 + $0x30] sm:$0xff]
  %v498 = vld [vmem:[%s3 + $0x38] sm:$0xff]
  %500 = vset.pattern.permute.xlu0 0
  %501 = vperm.xlu0 %500, %v491
  %v502 = vpop.permute.xlu0 %501
  %505 = vset.pattern.permute.xlu0 0
  %506 = vperm.xlu0 %505, %v492
  %v507 = vpop.permute.xlu0 %506
  %510 = vset.pattern.permute.xlu0 0
  %511 = vperm.xlu0 %510, %v493
  %v512 = vpop.permute.xlu0 %511
  %515 = vset.pattern.permute.xlu0 0
  %516 = vperm.xlu0 %515, %v494
  %v517 = vpop.permute.xlu0 %516
  %520 = vset.pattern.permute.xlu0 0
  %521 = vperm.xlu0 %520, %v495
  %v522 = vpop.permute.xlu0 %521
  %525 = vset.pattern.permute.xlu0 0
  %526 = vperm.xlu0 %525, %v496
  %v527 = vpop.permute.xlu0 %526
  %530 = vset.pattern.permute.xlu0 0
  %531 = vperm.xlu0 %530, %v497
  %v532 = vpop.permute.xlu0 %531
  %535 = vset.pattern.permute.xlu0 0
  %536 = vperm.xlu0 %535, %v498
  %v537 = vpop.permute.xlu0 %536
  %v539 = vadd.f32 %v483, %v502
  %v540 = vadd.f32 %v484, %v507
  %v541 = vadd.f32 %v485, %v512
  %v542 = vadd.f32 %v486, %v517
  %v543 = vadd.f32 %v487, %v522
  %v544 = vadd.f32 %v488, %v527
  %v545 = vadd.f32 %v489, %v532
  %v546 = vadd.f32 %v490, %v537
  %v547 = vmax.f32 %v539, 0.0
  %v548 = vmax.f32 %v540, 0.0
  %v549 = vmax.f32 %v541, 0.0
  %v550 = vmax.f32 %v542, 0.0
  %v551 = vmax.f32 %v543, 0.0
  %v552 = vmax.f32 %v544, 0.0
  %v553 = vmax.f32 %v545, 0.0
  %v554 = vmax.f32 %v546, 0.0
  %555 = vst.msk [vmem:[%s4] sm:$0xff] %vm251, %v547
  %556 = vst.msk [vmem:[%s4 + $0x8] sm:$0xff] %vm251, %v548
  %557 = vst.msk [vmem:[%s4 + $0x10] sm:$0xff] %vm251, %v549
  %558 = vst.msk [vmem:[%s4 + $0x18] sm:$0xff] %vm251, %v550
  %559 = vst.msk [vmem:[%s4 + $0x20] sm:$0xff] %vm251, %v551
  %560 = vst.msk [vmem:[%s4 + $0x28] sm:$0xff] %vm251, %v552
  %561 = vst.msk [vmem:[%s4 + $0x30] sm:$0xff] %vm251, %v553
  %562 = vst.msk [vmem:[%s4 + $0x38] sm:$0xff] %vm251, %v554
  // Predicated region
  $region18: #{tpu_custom_call.1} parent=0 // pred_check
    _
  $region19: #{tpu_custom_call.1} parent=0 // pred_check_branch
    %564 = sbr.rel (0) target = $region21
  $region20: #{tpu_custom_call.1} parent=0 // pred_region
    _
  $region21: #{tpu_custom_call.1} parent=0 // pred_fallthru
    _
  // Predicated region
  $region22: #{tpu_custom_call.1} parent=0 // pred_check
    _
  $region23: #{tpu_custom_call.1} parent=0 // pred_check_branch
    %566 = sbr.rel (0) target = $region25
  $region24: #{tpu_custom_call.1} parent=0 // pred_region
    _
  $region25: #{tpu_custom_call.1} parent=0 // pred_fallthru
    _

</llo_original>
